<compile_context>
chip_gen: v7x
topology: tpu7x:2x2x1
jax: 0.10.0
libtpu: 0.0.40
codegen_flags: <defaults>
</compile_context>

<pallas_src>
import functools

import jax
import jax.numpy as jnp
from jax import lax
from jax.experimental import pallas as pl
from jax.experimental.pallas import tpu as pltpu


def mlp_kernel(x_ref, w_ref, out_ref):
    x = x_ref[...]   # (tile_b, 3) f32 batch tile (batch-major on input only)
    w = w_ref[...]   # (16, 28)  f32 packed weights + biases (VMEM resident)

    # PyTorch layout: weight (out, in); bias stored as a column -> broadcasts over lanes.
    w1 = w[0:6, 0:3];    b1 = w[0:6, 21:22]
    w2 = w[0:6, 3:9];    b2 = w[0:6, 22:23]
    w3 = w[0:6, 9:15];   b3 = w[0:6, 23:24]
    w4 = w[0:10, 15:21]; b4 = w[0:10, 24:25]

    dn_nt = (((1,), (1,)), ((), ()))  # (o,i) x (b,i) -> (o,b): contract feature axes
    dn_nn = (((1,), (0,)), ((), ()))  # (o,i) x (i,b) -> (o,b)

    # Feature-major chain: every activation is (features, tile_b), lane-dense.
    h = lax.dot_general(w1, x, dn_nt, preferred_element_type=jnp.float32) + b1
    h = jnp.maximum(h, 0.0)                                                   # (6, tb)
    h = lax.dot_general(w2, h, dn_nn, preferred_element_type=jnp.float32) + b2
    h = jnp.maximum(h, 0.0)                                                   # (6, tb)
    h = lax.dot_general(w3, h, dn_nn, preferred_element_type=jnp.float32) + b3
    h = jnp.maximum(h, 0.0)                                                   # (6, tb)
    logits = lax.dot_general(w4, h, dn_nn,
                             preferred_element_type=jnp.float32) + b4         # (10, tb)

    # log_softmax over the feature (sublane) axis, independently per batch lane.
    m = jnp.max(logits, axis=0, keepdims=True)                                # (1, tb)
    shifted = logits - m
    lse = jnp.log(jnp.sum(jnp.exp(shifted), axis=0, keepdims=True))           # (1, tb)
    out_ref[...] = (shifted - lse).astype(out_ref.dtype)                      # (10, tb)


def _round_up(n, m):
    return ((n + m - 1) // m) * m


def pack_params(params):
    """Pack all weights and biases into a single (16, 28) f32 array (one DMA).

    Columns: [w1 (3) | w2 (6) | w3 (6) | w4 (6) | b1 | b2 | b3 | b4].
    Call once at init time (outside the per-call jit path).
    """
    w = jnp.zeros((16, 28), jnp.float32)
    w = w.at[0:6, 0:3].set(params["w1"].astype(jnp.float32))
    w = w.at[0:6, 3:9].set(params["w2"].astype(jnp.float32))
    w = w.at[0:6, 9:15].set(params["w3"].astype(jnp.float32))
    w = w.at[0:10, 15:21].set(params["w4"].astype(jnp.float32))
    w = w.at[0:6, 21].set(params["b1"].astype(jnp.float32))
    w = w.at[0:6, 22].set(params["b2"].astype(jnp.float32))
    w = w.at[0:6, 23].set(params["b3"].astype(jnp.float32))
    w = w.at[0:10, 24].set(params["b4"].astype(jnp.float32))
    return w


@functools.partial(jax.jit, static_argnames=("tile_b",))
def net_forward(x, w_packed, *, tile_b=8192):
    """x: (B, 3) float32; w_packed: (16, 28) from pack_params. Returns (B, 10)."""
    B = x.shape[0]
    # Lane-dense batch tiles: multiple of 128, capped at ~half the batch so the
    # "parallel" grid has >= 2 steps (v7x megacore), floor of one 128-lane tile.
    # Note: the (tile_b, 3) input tile is lane-padded in VMEM (512 B/row), so
    # tile_b beyond ~16K needs the VMEM budget below re-derived.
    half = _round_up(max(pl.cdiv(B, 2), 1), 128)
    tb = max(128, min(_round_up(tile_b, 128), half))
    grid = (pl.cdiv(B, tb),)

    flops = 2 * B * (3 * 6 + 6 * 6 + 6 * 6 + 6 * 10)
    bytes_accessed = 4 * (B * 3 + B * 10 + 16 * 28)

    out_t = pl.pallas_call(
        mlp_kernel,
        out_shape=jax.ShapeDtypeStruct((10, B), jnp.float32),
        grid=grid,
        in_specs=[
            pl.BlockSpec((tb, 3), lambda i: (i, 0)),      # batch tile of x
            pl.BlockSpec((16, 28), lambda i: (0, 0)),     # packed params (resident)
        ],
        out_specs=pl.BlockSpec((10, tb), lambda i: (0, i)),   # lane-dense output
        compiler_params=pltpu.CompilerParams(
            dimension_semantics=("parallel",),
            vmem_limit_bytes=48 * 1024 * 1024),
        cost_estimate=pl.CostEstimate(
            flops=flops, transcendentals=11 * B, bytes_accessed=bytes_accessed),
    )(x, w_packed)
    # Transpose back to the PyTorch (B, 10) convention; downstream consumers that
    # can take (10, B) directly should skip this.
    return out_t.T


def init_params(key):
    """nn.Linear-style init; weights stored PyTorch-style as (out, in), bias (out,)."""
    dims = [(3, 6), (6, 6), (6, 6), (6, 10)]
    params = {}
    keys = jax.random.split(key, 2 * len(dims))
    for i, (fan_in, fan_out) in enumerate(dims):
        bound = float(fan_in) ** -0.5
        params[f"w{i + 1}"] = jax.random.uniform(
            keys[2 * i], (fan_out, fan_in), minval=-bound, maxval=bound,
            dtype=jnp.float32)
        params[f"b{i + 1}"] = jax.random.uniform(
            keys[2 * i + 1], (fan_out,), minval=-bound, maxval=bound,
            dtype=jnp.float32)
    return params


def reference_forward(x, params):
    h = jnp.maximum(x @ params["w1"].T + params["b1"], 0.0)
    h = jnp.maximum(h @ params["w2"].T + params["b2"], 0.0)
    h = jnp.maximum(h @ params["w3"].T + params["b3"], 0.0)
    logits = h @ params["w4"].T + params["b4"]
    return jax.nn.log_softmax(logits, axis=1)


if __name__ == "__main__":
    key = jax.random.PRNGKey(0)
    k_param, k_x1, k_x2 = jax.random.split(key, 3)
    params = init_params(k_param)
    w_packed = pack_params(params)   # packed once, outside the per-call path

    # Small demo batch: single grid step, oversized (padded) block.
    B = 8
    x = jax.random.normal(k_x1, (B, 3), dtype=jnp.float32)
    out = jax.block_until_ready(net_forward(x, w_packed))
    ref = reference_forward(x, params)
    assert out.shape == (B, 10)
    assert jnp.allclose(out, ref, atol=2e-5, rtol=2e-5), "mismatch vs reference (B=8)"

    # Multi-step grid with a ragged last block (300 = 2*128 + 44): exercises the
    # no-pad path where out-of-range output columns are masked on write.
    B2 = 300
    x2 = jax.random.normal(k_x2, (B2, 3), dtype=jnp.float32)
    out2 = jax.block_until_ready(net_forward(x2, w_packed, tile_b=128))
    ref2 = reference_forward(x2, params)
    assert out2.shape == (B2, 10)
    assert jnp.allclose(out2, ref2, atol=2e-5, rtol=2e-5), "mismatch vs reference (B=300)"

    print("KERNEL_OK")
</pallas_src>

<mosaic_0001>
module attributes {stable_mosaic.version = 11 : i64} {
  func.func @mlp_kernel(%arg0: i32, %arg1: memref<128x3xf32, #tpu.memory_space<vmem>>, %arg2: memref<16x28xf32, #tpu.memory_space<vmem>>, %arg3: memref<10x128xf32, #tpu.memory_space<vmem>>) attributes {dimension_semantics = [#tpu.dimension_semantics<parallel>], iteration_bounds = array<i64: 1>, scalar_prefetch = 0 : i64, scratch_operands = 0 : i64, tpu.core_type = #tpu.core_type<tc>, window_params = [{transform_indices = @transform_0, window_bounds = array<i64: 128, 3>}, {pipeline_mode = #tpu.pipeline_mode<synchronous>, transform_indices = @transform_1, window_bounds = array<i64: 16, 28>}, {transform_indices = @transform_2, window_bounds = array<i64: 10, 128>}]} {
    %c0 = arith.constant 0 : index
    %c0_0 = arith.constant 0 : index
    %0 = vector.load %arg1[%c0, %c0_0] : memref<128x3xf32, #tpu.memory_space<vmem>>, vector<128x3xf32>
    %c0_1 = arith.constant 0 : index
    %c0_2 = arith.constant 0 : index
    %1 = vector.load %arg2[%c0_1, %c0_2] : memref<16x28xf32, #tpu.memory_space<vmem>>, vector<16x28xf32>
    %2 = vector.extract_strided_slice %1 {offsets = [0, 0], sizes = [6, 3], strides = [1, 1]} : vector<16x28xf32> to vector<6x3xf32>
    %3 = vector.extract_strided_slice %1 {offsets = [0, 21], sizes = [6, 1], strides = [1, 1]} : vector<16x28xf32> to vector<6x1xf32>
    %4 = vector.extract_strided_slice %1 {offsets = [0, 3], sizes = [6, 6], strides = [1, 1]} : vector<16x28xf32> to vector<6x6xf32>
    %5 = vector.extract_strided_slice %1 {offsets = [0, 22], sizes = [6, 1], strides = [1, 1]} : vector<16x28xf32> to vector<6x1xf32>
    %6 = vector.extract_strided_slice %1 {offsets = [0, 9], sizes = [6, 6], strides = [1, 1]} : vector<16x28xf32> to vector<6x6xf32>
    %7 = vector.extract_strided_slice %1 {offsets = [0, 23], sizes = [6, 1], strides = [1, 1]} : vector<16x28xf32> to vector<6x1xf32>
    %8 = vector.extract_strided_slice %1 {offsets = [0, 15], sizes = [10, 6], strides = [1, 1]} : vector<16x28xf32> to vector<10x6xf32>
    %9 = vector.extract_strided_slice %1 {offsets = [0, 24], sizes = [10, 1], strides = [1, 1]} : vector<16x28xf32> to vector<10x1xf32>
    %cst = arith.constant dense<0.000000e+00> : vector<6x128xf32>
    %10 = tpu.matmul %2, %0, %cst {dimension_numbers = #tpu.dot_dimension_numbers<[1], [1], [0], [0], [0, 0, 1, 0], [], []>} : vector<6x3xf32>, vector<128x3xf32>, vector<6x128xf32> -> vector<6x128xf32>
    %11 = vector.broadcast %3 : vector<6x1xf32> to vector<6x128xf32>
    %12 = arith.addf %10, %11 : vector<6x128xf32>
    %cst_3 = arith.constant 0.000000e+00 : f32
    %13 = vector.broadcast %cst_3 : f32 to vector<6x128xf32>
    %14 = arith.maximumf %12, %13 : vector<6x128xf32>
    %cst_4 = arith.constant dense<0.000000e+00> : vector<6x128xf32>
    %15 = tpu.matmul %4, %14, %cst_4 {dimension_numbers = #tpu.dot_dimension_numbers<[1], [0], [0], [1], [0, 0, 1, 1], [], []>} : vector<6x6xf32>, vector<6x128xf32>, vector<6x128xf32> -> vector<6x128xf32>
    %16 = vector.broadcast %5 : vector<6x1xf32> to vector<6x128xf32>
    %17 = arith.addf %15, %16 : vector<6x128xf32>
    %cst_5 = arith.constant 0.000000e+00 : f32
    %18 = vector.broadcast %cst_5 : f32 to vector<6x128xf32>
    %19 = arith.maximumf %17, %18 : vector<6x128xf32>
    %cst_6 = arith.constant dense<0.000000e+00> : vector<6x128xf32>
    %20 = tpu.matmul %6, %19, %cst_6 {dimension_numbers = #tpu.dot_dimension_numbers<[1], [0], [0], [1], [0, 0, 1, 1], [], []>} : vector<6x6xf32>, vector<6x128xf32>, vector<6x128xf32> -> vector<6x128xf32>
    %21 = vector.broadcast %7 : vector<6x1xf32> to vector<6x128xf32>
    %22 = arith.addf %20, %21 : vector<6x128xf32>
    %cst_7 = arith.constant 0.000000e+00 : f32
    %23 = vector.broadcast %cst_7 : f32 to vector<6x128xf32>
    %24 = arith.maximumf %22, %23 : vector<6x128xf32>
    %cst_8 = arith.constant dense<0.000000e+00> : vector<10x128xf32>
    %25 = tpu.matmul %8, %24, %cst_8 {dimension_numbers = #tpu.dot_dimension_numbers<[1], [0], [0], [1], [0, 0, 1, 1], [], []>} : vector<10x6xf32>, vector<6x128xf32>, vector<10x128xf32> -> vector<10x128xf32>
    %26 = vector.broadcast %9 : vector<10x1xf32> to vector<10x128xf32>
    %27 = arith.addf %25, %26 : vector<10x128xf32>
    %cst_9 = arith.constant dense<0xFF800000> : vector<128xf32>
    %28 = vector.multi_reduction <maximumf>, %27, %cst_9 [0] : vector<10x128xf32> to vector<128xf32>
    %29 = vector.shape_cast %28 : vector<128xf32> to vector<1x128xf32>
    %30 = vector.broadcast %29 : vector<1x128xf32> to vector<10x128xf32>
    %31 = arith.subf %27, %30 : vector<10x128xf32>
    %32 = math.exp %31 : vector<10x128xf32>
    %cst_10 = arith.constant dense<0.000000e+00> : vector<128xf32>
    %33 = vector.multi_reduction <add>, %32, %cst_10 [0] : vector<10x128xf32> to vector<128xf32>
    %34 = vector.shape_cast %33 : vector<128xf32> to vector<1x128xf32>
    %35 = math.log %34 : vector<1x128xf32>
    %36 = vector.broadcast %35 : vector<1x128xf32> to vector<10x128xf32>
    %37 = arith.subf %31, %36 : vector<10x128xf32>
    %c0_11 = arith.constant 0 : index
    %c0_12 = arith.constant 0 : index
    %38 = vector.load %arg3[%c0_11, %c0_12] : memref<10x128xf32, #tpu.memory_space<vmem>>, vector<10x128xf32>
    tpu.vector_store %arg3[%c0_11, %c0_12], %37 {strides = array<i32>} : memref<10x128xf32, #tpu.memory_space<vmem>>, vector<10x128xf32>,
    return
  }
  func.func @transform_0(%arg0: i32) -> (i32, i32) {
    %c0_i32 = arith.constant 0 : i32
    %c0_i32_0 = arith.constant 0 : i32
    return %arg0, %c0_i32 : i32, i32
  }
  func.func @transform_1(%arg0: i32) -> (i32, i32) {
    %c0_i32 = arith.constant 0 : i32
    %c0_i32_0 = arith.constant 0 : i32
    %c0_i32_1 = arith.constant 0 : i32
    return %c0_i32, %c0_i32_0 : i32, i32
  }
  func.func @transform_2(%arg0: i32) -> (i32, i32) {
    %c0_i32 = arith.constant 0 : i32
    %c0_i32_0 = arith.constant 0 : i32
    return %c0_i32, %arg0 : i32, i32
  }
}

</mosaic_0001>

<llo_original>
// kernel: net_forward.1
$region0: #{net_forward.1}
  #allocation0 [shape = 'u32[]', space=smem, size = 0x4, offset = 0x4, fixed_abs, tag = 'smem constant byte address 0x4 - core index']
  #allocation1 [shape = 'u32[144,128]{1,0:T(1,128)}', space=vmem, size = 0x12000, scoped, tag = 'internal scratch']
  %s0 = inlined_call_operand.vmem [shape: f32[8,3], index: 0, kind: input, shape index: {}]
  %s1 = inlined_call_operand.hbm [shape: f32[16,28], index: 1, kind: input, shape index: {}]
  %s2 = inlined_call_operand.vmem [shape: f32[10,8], index: 2, kind: output, shape index: {}]
  %s3 = sld [smem:[#allocation0]]
  $region22: #{net_forward.1} parent=0
    _
  %s5 = ssub.s32 1, %s3
  %s6 = scalar_select 0, %s5, %s3
  $region1: #{net_forward.1} parent=0
    #allocation2 [shape = 'u8[8192]{0}', space=vmem, size = 0x2000, scoped, tag = 'input window, operand 1, single buffered']
    #allocation3 [shape = 's32[1]{0}', space=sflag, size = 0x4, scoped, tag = 'scoped memory for net_forward.1']
    %7 = vsyncpa [#allocation3], 0
    // Predicated region
    $region2: #{net_forward.1} parent=1 // pred_check
      _
    $region3: #{net_forward.1} parent=1 // pred_check_branch
      %9 = sbr.rel (0) target = $region5
    $region4: #{net_forward.1} parent=1 // pred_region
      _
    $region5: #{net_forward.1} parent=1 // pred_fallthru
      _
    // Predicated region
    $region6: #{net_forward.1} parent=1 // pred_check
      _
    $region7: #{net_forward.1} parent=1 // pred_check_branch
      %11 = sbr.rel (0) target = $region9
    $region8: #{net_forward.1} parent=1 // pred_region
      %s13 = ssub.s32 256, 256
      %14 = vsyncadd [#allocation3], %s13
      %s15 = sshll.u32 [#allocation2], 4
      %s16 = int_to_ptr.vmem [resolvable:$true] %s15
      %21 = dma.hbm_to_vmem [thread:$0]  %s1, 256, %s16, [#allocation3], 128, 128, 8
    $region9: #{net_forward.1} parent=1 // pred_fallthru
      _
    // Predicated region
    $region10: #{net_forward.1} parent=1 // pred_check
      _
    $region11: #{net_forward.1} parent=1 // pred_check_branch
      %23 = sbr.rel (0) target = $region13
    $region12: #{net_forward.1} parent=1 // pred_region
      %24 = dma.done [#allocation3], 256
    $region13: #{net_forward.1} parent=1 // pred_fallthru
      _
    %v25 = vld [vmem:[%s0] sm:$0xff]
    %v26 = vld [vmem:[%s0 + $0x8] sm:$0xff]
    %v27 = vld [vmem:[%s0 + $0x10] sm:$0xff]
    %v28 = vld [vmem:[%s0 + $0x18] sm:$0xff]
    %v29 = vld [vmem:[%s0 + $0x20] sm:$0xff]
    %v30 = vld [vmem:[%s0 + $0x28] sm:$0xff]
    %v31 = vld [vmem:[%s0 + $0x30] sm:$0xff]
    %v32 = vld [vmem:[%s0 + $0x38] sm:$0xff]
    %v33 = vld [vmem:[%s0 + $0x40] sm:$0xff]
    %v34 = vld [vmem:[%s0 + $0x48] sm:$0xff]
    %v35 = vld [vmem:[%s0 + $0x50] sm:$0xff]
    %v36 = vld [vmem:[%s0 + $0x58] sm:$0xff]
    %v37 = vld [vmem:[%s0 + $0x60] sm:$0xff]
    %v38 = vld [vmem:[%s0 + $0x68] sm:$0xff]
    %v39 = vld [vmem:[%s0 + $0x70] sm:$0xff]
    %v40 = vld [vmem:[%s0 + $0x78] sm:$0xff]
    %v41 = vld [vmem:[#allocation2] sm:$0xff]
    %v42 = vld [vmem:[#allocation2 + $0x8] sm:$0xff]
    %44 = vset.pattern.permute.xlu0 21
    %45 = vperm.xlu0 %44, %v41
    %v46 = vpop.permute.xlu0 %45
    %vm48 = vcmask 23552
    %v49 = vsel %vm48, %v41, 0
    %v52 = vsel %vm48, %v25, 0
    %v55 = vsel %vm48, %v26, 0
    %v58 = vsel %vm48, %v27, 0
    %v61 = vsel %vm48, %v28, 0
    %v64 = vsel %vm48, %v29, 0
    %v67 = vsel %vm48, %v30, 0
    %v70 = vsel %vm48, %v31, 0
    %v73 = vsel %vm48, %v32, 0
    %v76 = vsel %vm48, %v33, 0
    %v79 = vsel %vm48, %v34, 0
    %v82 = vsel %vm48, %v35, 0
    %v85 = vsel %vm48, %v36, 0
    %v88 = vsel %vm48, %v37, 0
    %v91 = vsel %vm48, %v38, 0
    %v94 = vsel %vm48, %v39, 0
    %v97 = vsel %vm48, %v40, 0
    %99 = vmatprep.subr.mxu0 0.0
    %100 = vmatpush1.xpose.msra.mxu0 %v52
    %101 = vmatprep.subr.mxu0 0.0
    %102 = vmatpush1.xpose.msra.mxu0 %v55
    %103 = vmatprep.subr.mxu0 0.0
    %104 = vmatpush1.xpose.msra.mxu0 %v58
    %105 = vmatprep.subr.mxu0 0.0
    %106 = vmatpush1.xpose.msra.mxu0 %v61
    %107 = vmatprep.subr.mxu0 0.0
    %108 = vmatpush1.xpose.msra.mxu0 %v64
    %109 = vmatprep.subr.mxu0 0.0
    %110 = vmatpush1.xpose.msra.mxu0 %v67
    %111 = vmatprep.subr.mxu0 0.0
    %112 = vmatpush1.xpose.msra.mxu0 %v70
    %113 = vmatprep.subr.mxu0 0.0
    %114 = vmatpush1.xpose.msra.mxu0 %v73
    %115 = vmatprep.subr.mxu0 0.0
    %116 = vmatpush1.xpose.msra.mxu0 %v76
    %117 = vmatprep.subr.mxu0 0.0
    %118 = vmatpush1.xpose.msra.mxu0 %v79
    %119 = vmatprep.subr.mxu0 0.0
    %120 = vmatpush1.xpose.msra.mxu0 %v82
    %121 = vmatprep.subr.mxu0 0.0
    %122 = vmatpush1.xpose.msra.mxu0 %v85
    %123 = vmatprep.subr.mxu0 0.0
    %124 = vmatpush1.xpose.msra.mxu0 %v88
    %125 = vmatprep.subr.mxu0 0.0
    %126 = vmatpush1.xpose.msra.mxu0 %v91
    %127 = vmatprep.subr.mxu0 0.0
    %128 = vmatpush1.xpose.msra.mxu0 %v94
    %129 = vmatprep.subr.mxu0 0.0
    %130 = vmatpush1.xpose.msra.mxu0 %v97
    %131 = vmatprep.subr.mxu0 0.0
    %132 = vmatpush1.xpose.msra.mxu0 0.0
    %133 = vmatprep.subr.mxu0 0.0
    %134 = vmatpush1.xpose.msra.mxu0 0.0
    %135 = vmatprep.subr.mxu0 0.0
    %136 = vmatpush1.xpose.msra.mxu0 0.0
    %137 = vmatprep.subr.mxu0 0.0
    %138 = vmatpush1.xpose.msra.mxu0 0.0
    %139 = vmatprep.subr.mxu0 0.0
    %140 = vmatpush1.xpose.msra.mxu0 0.0
    %141 = vmatprep.subr.mxu0 0.0
    %142 = vmatpush1.xpose.msra.mxu0 0.0
    %143 = vmatprep.subr.mxu0 0.0
    %144 = vmatpush1.xpose.msra.mxu0 0.0
    %145 = vmatprep.subr.mxu0 0.0
    %146 = vmatpush1.xpose.msra.mxu0 0.0
    %147 = vmatprep.subr.mxu0 0.0
    %148 = vmatpush1.xpose.msra.mxu0 0.0
    %149 = vmatprep.subr.mxu0 0.0
    %150 = vmatpush1.xpose.msra.mxu0 0.0
    %151 = vmatprep.subr.mxu0 0.0
    %152 = vmatpush1.xpose.msra.mxu0 0.0
    %153 = vmatprep.subr.mxu0 0.0
    %154 = vmatpush1.xpose.msra.mxu0 0.0
    %155 = vmatprep.subr.mxu0 0.0
    %156 = vmatpush1.xpose.msra.mxu0 0.0
    %157 = vmatprep.subr.mxu0 0.0
    %158 = vmatpush1.xpose.msra.mxu0 0.0
    %159 = vmatprep.subr.mxu0 0.0
    %160 = vmatpush1.xpose.msra.mxu0 0.0
    %161 = vmatprep.subr.mxu0 0.0
    %162 = vmatpush1.xpose.msra.mxu0 0.0
    %163 = vmatprep.mubr.f32.mxu0 0.0
    %164 = vmatmul.mubr.f32.gmra.mrb[0].mxu0 %v49
    %v165 = vpop.f32.mrb[0].mxu0
    %v166 = vadd.f32 %v46, %v165
    %v167 = vpop.f32.mrb[0].mxu0
    %168 = vdwg.mxu0
    %v169 = vmax.f32 %v166, 0.0
    %170 = vset.pattern.permute.xlu0 22
    %171 = vperm.xlu0 %170, %v41
    %v172 = vpop.permute.xlu0 %171
    %174 = vrot.lane.b32.xlu0 %v41, 125
    %v175 = vpop.permute.xlu0 %174
    %vm176 = vcmask 48128
    %v177 = vsel %vm176, %v175, 0
    %vm179 = vcmask 1045504
    %v181 = vsel %vm179, %v169, 0
    %183 = vmatprep.subr.mxu0 0.0
    %184 = vmatpush1.msra.mxu0 %v181
    %185 = vmatprep.subr.mxu0 0.0
    %186 = vmatpush1.msra.mxu0 0.0
    %187 = vmatprep.subr.mxu0 0.0
    %188 = vmatpush1.msra.mxu0 0.0
    %189 = vmatprep.subr.mxu0 0.0
    %190 = vmatpush1.msra.mxu0 0.0
    %191 = vmatprep.subr.mxu0 0.0
    %192 = vmatpush1.msra.mxu0 0.0
    %193 = vmatprep.subr.mxu0 0.0
    %194 = vmatpush1.msra.mxu0 0.0
    %195 = vmatprep.subr.mxu0 0.0
    %196 = vmatpush1.msra.mxu0 0.0
    %197 = vmatprep.subr.mxu0 0.0
    %198 = vmatpush1.msra.mxu0 0.0
    %199 = vmatprep.subr.mxu0 0.0
    %200 = vmatpush1.msra.mxu0 0.0
    %201 = vmatprep.subr.mxu0 0.0
    %202 = vmatpush1.msra.mxu0 0.0
    %203 = vmatprep.subr.mxu0 0.0
    %204 = vmatpush1.msra.mxu0 0.0
    %205 = vmatprep.subr.mxu0 0.0
    %206 = vmatpush1.msra.mxu0 0.0
    %207 = vmatprep.subr.mxu0 0.0
    %208 = vmatpush1.msra.mxu0 0.0
    %209 = vmatprep.subr.mxu0 0.0
    %210 = vmatpush1.msra.mxu0 0.0
    %211 = vmatprep.subr.mxu0 0.0
    %212 = vmatpush1.msra.mxu0 0.0
    %213 = vmatprep.subr.mxu0 0.0
    %214 = vmatpush1.msra.mxu0 0.0
    %215 = vmatprep.subr.mxu0 0.0
    %216 = vmatpush1.msra.mxu0 0.0
    %217 = vmatprep.subr.mxu0 0.0
    %218 = vmatpush1.msra.mxu0 0.0
    %219 = vmatprep.subr.mxu0 0.0
    %220 = vmatpush1.msra.mxu0 0.0
    %221 = vmatprep.subr.mxu0 0.0
    %222 = vmatpush1.msra.mxu0 0.0
    %223 = vmatprep.subr.mxu0 0.0
    %224 = vmatpush1.msra.mxu0 0.0
    %225 = vmatprep.subr.mxu0 0.0
    %226 = vmatpush1.msra.mxu0 0.0
    %227 = vmatprep.subr.mxu0 0.0
    %228 = vmatpush1.msra.mxu0 0.0
    %229 = vmatprep.subr.mxu0 0.0
    %230 = vmatpush1.msra.mxu0 0.0
    %231 = vmatprep.subr.mxu0 0.0
    %232 = vmatpush1.msra.mxu0 0.0
    %233 = vmatprep.subr.mxu0 0.0
    %234 = vmatpush1.msra.mxu0 0.0
    %235 = vmatprep.subr.mxu0 0.0
    %236 = vmatpush1.msra.mxu0 0.0
    %237 = vmatprep.subr.mxu0 0.0
    %238 = vmatpush1.msra.mxu0 0.0
    %239 = vmatprep.subr.mxu0 0.0
    %240 = vmatpush1.msra.mxu0 0.0
    %241 = vmatprep.subr.mxu0 0.0
    %242 = vmatpush1.msra.mxu0 0.0
    %243 = vmatprep.subr.mxu0 0.0
    %244 = vmatpush1.msra.mxu0 0.0
    %245 = vmatprep.subr.mxu0 0.0
    %246 = vmatpush1.msra.mxu0 0.0
    %247 = vmatprep.mubr.f32.mxu0 0.0
    %248 = vmatmul.mubr.f32.gmra.mrb[0].mxu0 %v177
    %v249 = vpop.f32.mrb[0].mxu0
    %v250 = vadd.f32 %v172, %v249
    %v251 = vpop.f32.mrb[0].mxu0
    %252 = vdwg.mxu0
    %v253 = vmax.f32 %v250, 0.0
    %254 = vset.pattern.permute.xlu0 23
    %255 = vperm.xlu0 %254, %v41
    %v256 = vpop.permute.xlu0 %255
    %258 = vrot.lane.b32.xlu0 %v41, 119
    %v259 = vpop.permute.xlu0 %258
    %v260 = vsel %vm176, %v259, 0
    %v263 = vsel %vm179, %v253, 0
    %265 = vmatprep.subr.mxu0 0.0
    %266 = vmatpush1.msra.mxu0 %v263
    %267 = vmatprep.subr.mxu0 0.0
    %268 = vmatpush1.msra.mxu0 0.0
    %269 = vmatprep.subr.mxu0 0.0
    %270 = vmatpush1.msra.mxu0 0.0
    %271 = vmatprep.subr.mxu0 0.0
    %272 = vmatpush1.msra.mxu0 0.0
    %273 = vmatprep.subr.mxu0 0.0
    %274 = vmatpush1.msra.mxu0 0.0
    %275 = vmatprep.subr.mxu0 0.0
    %276 = vmatpush1.msra.mxu0 0.0
    %277 = vmatprep.subr.mxu0 0.0
    %278 = vmatpush1.msra.mxu0 0.0
    %279 = vmatprep.subr.mxu0 0.0
    %280 = vmatpush1.msra.mxu0 0.0
    %281 = vmatprep.subr.mxu0 0.0
    %282 = vmatpush1.msra.mxu0 0.0
    %283 = vmatprep.subr.mxu0 0.0
    %284 = vmatpush1.msra.mxu0 0.0
    %285 = vmatprep.subr.mxu0 0.0
    %286 = vmatpush1.msra.mxu0 0.0
    %287 = vmatprep.subr.mxu0 0.0
    %288 = vmatpush1.msra.mxu0 0.0
    %289 = vmatprep.subr.mxu0 0.0
    %290 = vmatpush1.msra.mxu0 0.0
    %291 = vmatprep.subr.mxu0 0.0
    %292 = vmatpush1.msra.mxu0 0.0
    %293 = vmatprep.subr.mxu0 0.0
    %294 = vmatpush1.msra.mxu0 0.0
    %295 = vmatprep.subr.mxu0 0.0
    %296 = vmatpush1.msra.mxu0 0.0
    %297 = vmatprep.subr.mxu0 0.0
    %298 = vmatpush1.msra.mxu0 0.0
    %299 = vmatprep.subr.mxu0 0.0
    %300 = vmatpush1.msra.mxu0 0.0
    %301 = vmatprep.subr.mxu0 0.0
    %302 = vmatpush1.msra.mxu0 0.0
    %303 = vmatprep.subr.mxu0 0.0
    %304 = vmatpush1.msra.mxu0 0.0
    %305 = vmatprep.subr.mxu0 0.0
    %306 = vmatpush1.msra.mxu0 0.0
    %307 = vmatprep.subr.mxu0 0.0
    %308 = vmatpush1.msra.mxu0 0.0
    %309 = vmatprep.subr.mxu0 0.0
    %310 = vmatpush1.msra.mxu0 0.0
    %311 = vmatprep.subr.mxu0 0.0
    %312 = vmatpush1.msra.mxu0 0.0
    %313 = vmatprep.subr.mxu0 0.0
    %314 = vmatpush1.msra.mxu0 0.0
    %315 = vmatprep.subr.mxu0 0.0
    %316 = vmatpush1.msra.mxu0 0.0
    %317 = vmatprep.subr.mxu0 0.0
    %318 = vmatpush1.msra.mxu0 0.0
    %319 = vmatprep.subr.mxu0 0.0
    %320 = vmatpush1.msra.mxu0 0.0
    %321 = vmatprep.subr.mxu0 0.0
    %322 = vmatpush1.msra.mxu0 0.0
    %323 = vmatprep.subr.mxu0 0.0
    %324 = vmatpush1.msra.mxu0 0.0
    %325 = vmatprep.subr.mxu0 0.0
    %326 = vmatpush1.msra.mxu0 0.0
    %327 = vmatprep.subr.mxu0 0.0
    %328 = vmatpush1.msra.mxu0 0.0
    %329 = vmatprep.mubr.f32.mxu0 0.0
    %330 = vmatmul.mubr.f32.gmra.mrb[0].mxu0 %v260
    %v331 = vpop.f32.mrb[0].mxu0
    %v332 = vadd.f32 %v256, %v331
    %v333 = vpop.f32.mrb[0].mxu0
    %334 = vdwg.mxu0
    %v335 = vmax.f32 %v332, 0.0
    %336 = vset.pattern.permute.xlu0 24
    %337 = vperm.xlu0 %336, %v41
    %v338 = vpop.permute.xlu0 %337
    %341 = vset.pattern.permute.xlu0 24
    %342 = vperm.xlu0 %341, %v42
    %v343 = vpop.permute.xlu0 %342
    %345 = vrot.lane.b32.xlu0 %v41, 113
    %v346 = vpop.permute.xlu0 %345
    %347 = vrot.lane.b32.xlu0 %v42, 113
    %v348 = vpop.permute.xlu0 %347
    %v349 = vsel %vm176, %v346, 0
    %v351 = vsel %vm176, %v348, 0
    %v354 = vsel %vm179, %v335, 0
    %356 = vmatprep.subr.mxu0 0.0
    %357 = vmatpush1.msra.mxu0 %v354
    %358 = vmatprep.subr.mxu0 0.0
    %359 = vmatpush1.msra.mxu0 0.0
    %360 = vmatprep.subr.mxu0 0.0
    %361 = vmatpush1.msra.mxu0 0.0
    %362 = vmatprep.subr.mxu0 0.0
    %363 = vmatpush1.msra.mxu0 0.0
    %364 = vmatprep.subr.mxu0 0.0
    %365 = vmatpush1.msra.mxu0 0.0
    %366 = vmatprep.subr.mxu0 0.0
    %367 = vmatpush1.msra.mxu0 0.0
    %368 = vmatprep.subr.mxu0 0.0
    %369 = vmatpush1.msra.mxu0 0.0
    %370 = vmatprep.subr.mxu0 0.0
    %371 = vmatpush1.msra.mxu0 0.0
    %372 = vmatprep.subr.mxu0 0.0
    %373 = vmatpush1.msra.mxu0 0.0
    %374 = vmatprep.subr.mxu0 0.0
    %375 = vmatpush1.msra.mxu0 0.0
    %376 = vmatprep.subr.mxu0 0.0
    %377 = vmatpush1.msra.mxu0 0.0
    %378 = vmatprep.subr.mxu0 0.0
    %379 = vmatpush1.msra.mxu0 0.0
    %380 = vmatprep.subr.mxu0 0.0
    %381 = vmatpush1.msra.mxu0 0.0
    %382 = vmatprep.subr.mxu0 0.0
    %383 = vmatpush1.msra.mxu0 0.0
    %384 = vmatprep.subr.mxu0 0.0
    %385 = vmatpush1.msra.mxu0 0.0
    %386 = vmatprep.subr.mxu0 0.0
    %387 = vmatpush1.msra.mxu0 0.0
    %388 = vmatprep.subr.mxu0 0.0
    %389 = vmatpush1.msra.mxu0 0.0
    %390 = vmatprep.subr.mxu0 0.0
    %391 = vmatpush1.msra.mxu0 0.0
    %392 = vmatprep.subr.mxu0 0.0
    %393 = vmatpush1.msra.mxu0 0.0
    %394 = vmatprep.subr.mxu0 0.0
    %395 = vmatpush1.msra.mxu0 0.0
    %396 = vmatprep.subr.mxu0 0.0
    %397 = vmatpush1.msra.mxu0 0.0
    %398 = vmatprep.subr.mxu0 0.0
    %399 = vmatpush1.msra.mxu0 0.0
    %400 = vmatprep.subr.mxu0 0.0
    %401 = vmatpush1.msra.mxu0 0.0
    %402 = vmatprep.subr.mxu0 0.0
    %403 = vmatpush1.msra.mxu0 0.0
    %404 = vmatprep.subr.mxu0 0.0
    %405 = vmatpush1.msra.mxu0 0.0
    %406 = vmatprep.subr.mxu0 0.0
    %407 = vmatpush1.msra.mxu0 0.0
    %408 = vmatprep.subr.mxu0 0.0
    %409 = vmatpush1.msra.mxu0 0.0
    %410 = vmatprep.subr.mxu0 0.0
    %411 = vmatpush1.msra.mxu0 0.0
    %412 = vmatprep.subr.mxu0 0.0
    %413 = vmatpush1.msra.mxu0 0.0
    %414 = vmatprep.subr.mxu0 0.0
    %415 = vmatpush1.msra.mxu0 0.0
    %416 = vmatprep.subr.mxu0 0.0
    %417 = vmatpush1.msra.mxu0 0.0
    %418 = vmatprep.subr.mxu0 0.0
    %419 = vmatpush1.msra.mxu0 0.0
    %420 = vmatprep.mubr.f32.mxu0 0.0
    %421 = vmatmul.mubr.f32.gmra.mrb[0].mxu0 %v349
    %v422 = vpop.f32.mrb[0].mxu0
    %v423 = vadd.f32 %v338, %v422
    %v424 = vpop.f32.mrb[0].mxu0
    %425 = vmatprep.mubr.f32.mxu0 0.0
    %426 = vmatmul.mubr.f32.gmra.mrb[0].mxu0 %v351
    %v427 = vpop.f32.mrb[0].mxu0
    %v428 = vadd.f32 %v343, %v427
    %v429 = vpop.f32.mrb[0].mxu0
    %430 = vdwg.mxu0
    %vm431 = vcmask 1041408
    %v432 = vsel %vm431, %v428, -inf
    %v433 = vmax.f32 %v423, %v432
    %v434 = vrot.slane %v433, 4
    %v435 = vmax.f32 %v433, %v434
    %v436 = vrot.slane %v435, 2
    %v437 = vmax.f32 %v435, %v436
    %v438 = vrot.slane %v437, 1
    %v439 = vmax.f32 %v437, %v438
    %v440 = vsub.f32 %v423, %v439
    %v441 = vsub.f32 %v428, %v439
    %v442 = vmul.f32 %v440, 1.442695
    %v443 = vpow.pop %v442
    %v444 = vmul.f32 %v441, 1.442695
    %v445 = vpow.pop %v444
    %v446 = vsel %vm431, %v445, 0.0
    %v447 = vadd.f32 %v443, %v446
    %v448 = vrot.slane %v447, 4
    %v449 = vadd.f32 %v447, %v448
    %v450 = vrot.slane %v449, 2
    %v451 = vadd.f32 %v449, %v450
    %v452 = vrot.slane %v451, 1
    %v453 = vadd.f32 %v451, %v452
    %v454 = vlog2.pop %v453
    %v455 = vmul.f32 %v454, 0.6931472
    %v456 = vsub.f32 %v440, %v455
    %v457 = vsub.f32 %v441, %v455
    %458 = vst [vmem:[%s2] sm:$0xff] %v456
    %459 = vst [vmem:[%s2 + $0x8] sm:$0x3] %v457
    // Predicated region
    $region14: #{net_forward.1} parent=1 // pred_check
      _
    $region15: #{net_forward.1} parent=1 // pred_check_branch
      %461 = sbr.rel (0) target = $region17
    $region16: #{net_forward.1} parent=1 // pred_region
      _
    $region17: #{net_forward.1} parent=1 // pred_fallthru
      _
    // Predicated region
    $region18: #{net_forward.1} parent=1 // pred_check
      _
    $region19: #{net_forward.1} parent=1 // pred_check_branch
      %463 = sbr.rel (0) target = $region21
    $region20: #{net_forward.1} parent=1 // pred_region
      _
    $region21: #{net_forward.1} parent=1 // pred_fallthru
      _
    %464 = vsyncpa [#allocation3], 1

</llo_original>
